<compile_context>
chip_gen: v7x
topology: tpu7x:2x2x1
jax: 0.10.0
libtpu: 0.0.40
codegen_flags: <defaults>
</compile_context>

<pallas_src>
import functools

import jax
import jax.numpy as jnp
from jax.experimental import pallas as pl
from jax.experimental.pallas import tpu as pltpu


def _round_up(a: int, b: int) -> int:
    return ((a + b - 1) // b) * b


def bert_output_kernel(x_ref, w1_ref, b1_ref, w2_ref, b2_ref, o_ref, *,
                       compute_dtype):
    # In-kernel cast of the streamed operand: hides under the MXU and removes
    # the un-hidden wrapper cast pass over x in HBM.
    x = x_ref[...].astype(compute_dtype)
    # dense: (TILE_M, H) @ (H, H) on the MXU, f32 accumulation.
    h = jnp.dot(x, w1_ref[...], preferred_element_type=jnp.float32)
    h = h + b1_ref[...]                      # f32 bias add (VPU)
    h = jnp.tanh(h)                          # f32 tanh (EUP slot)
    # out_proj: (TILE_M, H) @ (H, L_pad), f32 accumulation.
    out = jnp.dot(h.astype(w2_ref.dtype), w2_ref[...],
                  preferred_element_type=jnp.float32)
    o_ref[...] = (out + b2_ref[...]).astype(o_ref.dtype)


@functools.partial(jax.jit, static_argnames=("compute_dtype", "tile_m_max"))
def bert_output_layer_pallas(x, w1, b1, w2, b2, *,
                             compute_dtype=jnp.bfloat16, tile_m_max=2048):
    """
    x : (M, H)  float32, M = batch * seq
    w1: (H, H)  float32, (in, out) layout   -> dense weight
    b1: (H,)    float32                     -> dense bias
    w2: (H, L)  float32, (in, out) layout   -> out_proj weight
    b2: (L,)    float32                     -> out_proj bias
    returns (M, L) float32
    """
    M, H = x.shape
    L = w2.shape[1]

    # Lane-dense output: pad num_labels up to 128 lanes (minimum unmasked vst
    # width); do not pad further.
    L_pad = _round_up(L, 128)

    # Balanced M tiling (16-row granularity = bf16 sublane packing).
    n_steps = pl.cdiv(M, tile_m_max)
    if n_steps == 1 and M >= 512:
        n_steps = 2            # give both v7x TensorCores work
    if n_steps > 1 and n_steps % 2:
        n_steps += 1           # even step count -> no straggler core on v7x
    tile_m = max(16, _round_up(pl.cdiv(M, n_steps), 16))
    grid = (pl.cdiv(M, tile_m),)
    # NOTE: M is NOT padded; the last (partial) tile's out-of-bounds rows are
    # read as garbage and their writes are discarded by Pallas — correct since
    # every op here is row-wise.

    # Weights/biases: one-time, tiny prep (amortized over all M tiles).
    w1_c = w1.astype(compute_dtype)
    w2_c = jnp.pad(w2, ((0, 0), (0, L_pad - L))).astype(compute_dtype)
    b1_2d = b1.reshape(1, H).astype(jnp.float32)
    b2_2d = jnp.pad(b2, (0, L_pad - L)).reshape(1, L_pad).astype(jnp.float32)

    cost = pl.CostEstimate(
        flops=2 * M * H * (H + L_pad),
        transcendentals=M * H,
        bytes_accessed=(x.size * x.dtype.itemsize
                        + w1_c.size * w1_c.dtype.itemsize
                        + w2_c.size * w2_c.dtype.itemsize
                        + b1_2d.size * 4 + b2_2d.size * 4
                        + M * L_pad * 4),
    )

    kernel = functools.partial(bert_output_kernel, compute_dtype=compute_dtype)

    # TODO(synk): for H >~ 2-3k, single-buffer the resident weights
    # (pipeline_mode=pl.Buffered(1)) and/or tile the K axis with an f32 VMEM
    # accumulator (pl.when init/finalize) so double-buffered W1 stays inside
    # v7x's 64 MiB physical VMEM.
    out = pl.pallas_call(
        kernel,
        out_shape=jax.ShapeDtypeStruct((M, L_pad), jnp.float32),
        grid_spec=pltpu.PrefetchScalarGridSpec(
            num_scalar_prefetch=0,
            grid=grid,
            in_specs=[
                pl.BlockSpec((tile_m, H), lambda i: (i, 0)),   # x tile (pipelined, f32)
                pl.BlockSpec((H, H),      lambda i: (0, 0)),   # w1 (VMEM-resident)
                pl.BlockSpec((1, H),      lambda i: (0, 0)),   # b1 (resident)
                pl.BlockSpec((H, L_pad),  lambda i: (0, 0)),   # w2 (resident)
                pl.BlockSpec((1, L_pad),  lambda i: (0, 0)),   # b2 (resident)
            ],
            out_specs=pl.BlockSpec((tile_m, L_pad), lambda i: (i, 0)),
        ),
        compiler_params=pltpu.CompilerParams(
            dimension_semantics=("parallel",),
            vmem_limit_bytes=48 << 20,   # v7x-safe (64 MiB physical per TC)
        ),
        cost_estimate=cost,
    )(x, w1_c, b1_2d, w2_c, b2_2d)

    # TODO(synk): only L of L_pad lanes are useful; fold this slice into the
    # consumer (or emit bf16) if output HBM traffic ever becomes the bottleneck.
    return out[:, :L]


def bert_output_layer(x, w1, b1, w2, b2, *, min_rows_for_pallas=256,
                      min_hidden_for_pallas=128, force_pallas=False):
    """Dispatcher: at tiny shapes a plain XLA fusion beats kernel-launch and
    pipeline-setup overhead, so only use the Pallas path above the thresholds
    (or when forced, e.g. by the self-test)."""
    if not force_pallas and (x.shape[0] < min_rows_for_pallas
                             or x.shape[1] < min_hidden_for_pallas):
        return jnp.tanh(x @ w1 + b1) @ w2 + b2
    return bert_output_layer_pallas(x, w1, b1, w2, b2)


def reference_torch_semantics(x, w1_t, b1, w2_t, b2):
    """Pure-JAX reference using PyTorch's (out_features, in_features) storage."""
    h = jnp.tanh(x @ w1_t.T + b1)
    return h @ w2_t.T + b2


if __name__ == "__main__":
    # config: hidden_size=32, num_labels=4 ; input: batch=2, seq=8
    batch, seq, hidden, num_labels = 2, 8, 32, 4

    key = jax.random.PRNGKey(0)
    kx, kw1, kb1, kw2, kb2 = jax.random.split(key, 5)

    x = jax.random.normal(kx, (batch, seq, hidden), dtype=jnp.float32)

    # Random weights in PyTorch (out_features, in_features) layout: unlike the
    # module's constant-1 init, these are NOT symmetric, so a transposed-layout
    # bug in the kernel wrapper would be detected.
    w1_t = 0.1 * jax.random.normal(kw1, (hidden, hidden), dtype=jnp.float32)
    b1 = 0.1 * jax.random.normal(kb1, (hidden,), dtype=jnp.float32)
    w2_t = 0.1 * jax.random.normal(kw2, (num_labels, hidden), dtype=jnp.float32)
    b2 = 0.1 * jax.random.normal(kb2, (num_labels,), dtype=jnp.float32)

    x2d = x.reshape(batch * seq, hidden)
    ref = reference_torch_semantics(x2d, w1_t, b1, w2_t, b2)

    # --- Pallas kernel, bf16 MXU path (transpose to (in, out) layout) ---
    out = bert_output_layer(x2d, w1_t.T, b1, w2_t.T, b2, force_pallas=True)
    jax.block_until_ready(out)
    # bf16 MXU operands with f32 accumulation -> loosened tolerance (deliberate).
    assert jnp.allclose(out, ref, atol=5e-2, rtol=5e-2), "mismatch (bf16 path)"
    assert out.shape == (batch * seq, num_labels)

    # --- Pallas kernel, full-f32 path (supported compute_dtype) ---
    out_f32 = bert_output_layer_pallas(x2d, w1_t.T, b1, w2_t.T, b2,
                                       compute_dtype=jnp.float32)
    jax.block_until_ready(out_f32)
    assert jnp.allclose(out_f32, ref, atol=1e-4, rtol=1e-4), "mismatch (f32 path)"

    # --- module's actual init (constant-1 weights, zero biases) ---
    w1_c = jnp.ones((hidden, hidden), jnp.float32)
    w2_c = jnp.ones((num_labels, hidden), jnp.float32)
    b1_c = jnp.zeros((hidden,), jnp.float32)
    b2_c = jnp.zeros((num_labels,), jnp.float32)
    out_c = bert_output_layer(x2d, w1_c.T, b1_c, w2_c.T, b2_c, force_pallas=True)
    ref_c = reference_torch_semantics(x2d, w1_c, b1_c, w2_c, b2_c)
    jax.block_until_ready(out_c)
    assert jnp.allclose(out_c, ref_c, atol=5e-2, rtol=5e-2), "mismatch (const W)"

    out3d = out.reshape(batch, seq, num_labels)
    jax.block_until_ready(out3d)
    print("KERNEL_OK")
</pallas_src>

<mosaic_0001>
module attributes {stable_mosaic.version = 11 : i64} {
  func.func @bert_output_kernel(%arg0: i32, %arg1: memref<16x32xf32, #tpu.memory_space<vmem>>, %arg2: memref<32x32xbf16, #tpu.memory_space<vmem>>, %arg3: memref<1x32xf32, #tpu.memory_space<vmem>>, %arg4: memref<32x128xbf16, #tpu.memory_space<vmem>>, %arg5: memref<1x128xf32, #tpu.memory_space<vmem>>, %arg6: memref<16x128xf32, #tpu.memory_space<vmem>>) attributes {dimension_semantics = [#tpu.dimension_semantics<parallel>], iteration_bounds = array<i64: 1>, scalar_prefetch = 0 : i64, scratch_operands = 0 : i64, tpu.core_type = #tpu.core_type<tc>, window_params = [{transform_indices = @transform_0, window_bounds = array<i64: 16, 32>}, {pipeline_mode = #tpu.pipeline_mode<synchronous>, transform_indices = @transform_1, window_bounds = array<i64: 32, 32>}, {pipeline_mode = #tpu.pipeline_mode<synchronous>, transform_indices = @transform_2, window_bounds = array<i64: 1, 32>}, {pipeline_mode = #tpu.pipeline_mode<synchronous>, transform_indices = @transform_3, window_bounds = array<i64: 32, 128>}, {pipeline_mode = #tpu.pipeline_mode<synchronous>, transform_indices = @transform_4, window_bounds = array<i64: 1, 128>}, {transform_indices = @transform_5, window_bounds = array<i64: 16, 128>}]} {
    %c0 = arith.constant 0 : index
    %c0_0 = arith.constant 0 : index
    %0 = vector.load %arg1[%c0, %c0_0] : memref<16x32xf32, #tpu.memory_space<vmem>>, vector<16x32xf32>
    %1 = arith.truncf %0 : vector<16x32xf32> to vector<16x32xbf16>
    %c0_1 = arith.constant 0 : index
    %c0_2 = arith.constant 0 : index
    %2 = vector.load %arg2[%c0_1, %c0_2] : memref<32x32xbf16, #tpu.memory_space<vmem>>, vector<32x32xbf16>
    %cst = arith.constant dense<0.000000e+00> : vector<16x32xf32>
    %3 = tpu.matmul %1, %2, %cst {dimension_numbers = #tpu.dot_dimension_numbers<[1], [0], [0], [1], [0, 0, 1, 1], [], []>} : vector<16x32xbf16>, vector<32x32xbf16>, vector<16x32xf32> -> vector<16x32xf32>
    %c0_3 = arith.constant 0 : index
    %c0_4 = arith.constant 0 : index
    %4 = vector.load %arg3[%c0_3, %c0_4] : memref<1x32xf32, #tpu.memory_space<vmem>>, vector<1x32xf32>
    %5 = vector.broadcast %4 : vector<1x32xf32> to vector<16x32xf32>
    %6 = arith.addf %3, %5 : vector<16x32xf32>
    %7 = math.tanh %6 : vector<16x32xf32>
    %8 = arith.truncf %7 : vector<16x32xf32> to vector<16x32xbf16>
    %c0_5 = arith.constant 0 : index
    %c0_6 = arith.constant 0 : index
    %9 = vector.load %arg4[%c0_5, %c0_6] : memref<32x128xbf16, #tpu.memory_space<vmem>>, vector<32x128xbf16>
    %cst_7 = arith.constant dense<0.000000e+00> : vector<16x128xf32>
    %10 = tpu.matmul %8, %9, %cst_7 {dimension_numbers = #tpu.dot_dimension_numbers<[1], [0], [0], [1], [0, 0, 1, 1], [], []>} : vector<16x32xbf16>, vector<32x128xbf16>, vector<16x128xf32> -> vector<16x128xf32>
    %c0_8 = arith.constant 0 : index
    %c0_9 = arith.constant 0 : index
    %11 = vector.load %arg5[%c0_8, %c0_9] : memref<1x128xf32, #tpu.memory_space<vmem>>, vector<1x128xf32>
    %12 = vector.broadcast %11 : vector<1x128xf32> to vector<16x128xf32>
    %13 = arith.addf %10, %12 : vector<16x128xf32>
    %c0_10 = arith.constant 0 : index
    %c0_11 = arith.constant 0 : index
    %14 = vector.load %arg6[%c0_10, %c0_11] : memref<16x128xf32, #tpu.memory_space<vmem>>, vector<16x128xf32>
    tpu.vector_store %arg6[%c0_10, %c0_11], %13 {strides = array<i32>} : memref<16x128xf32, #tpu.memory_space<vmem>>, vector<16x128xf32>,
    return
  }
  func.func @transform_0(%arg0: i32) -> (i32, i32) {
    %c0_i32 = arith.constant 0 : i32
    %c0_i32_0 = arith.constant 0 : i32
    return %arg0, %c0_i32 : i32, i32
  }
  func.func @transform_1(%arg0: i32) -> (i32, i32) {
    %c0_i32 = arith.constant 0 : i32
    %c0_i32_0 = arith.constant 0 : i32
    %c0_i32_1 = arith.constant 0 : i32
    return %c0_i32, %c0_i32_0 : i32, i32
  }
  func.func @transform_2(%arg0: i32) -> (i32, i32) {
    %c0_i32 = arith.constant 0 : i32
    %c0_i32_0 = arith.constant 0 : i32
    %c0_i32_1 = arith.constant 0 : i32
    return %c0_i32, %c0_i32_0 : i32, i32
  }
  func.func @transform_3(%arg0: i32) -> (i32, i32) {
    %c0_i32 = arith.constant 0 : i32
    %c0_i32_0 = arith.constant 0 : i32
    %c0_i32_1 = arith.constant 0 : i32
    return %c0_i32, %c0_i32_0 : i32, i32
  }
  func.func @transform_4(%arg0: i32) -> (i32, i32) {
    %c0_i32 = arith.constant 0 : i32
    %c0_i32_0 = arith.constant 0 : i32
    %c0_i32_1 = arith.constant 0 : i32
    return %c0_i32, %c0_i32_0 : i32, i32
  }
  func.func @transform_5(%arg0: i32) -> (i32, i32) {
    %c0_i32 = arith.constant 0 : i32
    %c0_i32_0 = arith.constant 0 : i32
    return %arg0, %c0_i32 : i32, i32
  }
}

</mosaic_0001>

<llo_original>
// kernel: bert_output_layer_pallas.1
$region0: #{bert_output_layer_pallas.1}
  #allocation0 [shape = 'u32[]', space=smem, size = 0x4, offset = 0x4, fixed_abs, tag = 'smem constant byte address 0x4 - core index']
  #allocation1 [shape = 'u32[144,128]{1,0:T(1,128)}', space=vmem, size = 0x12000, scoped, tag = 'internal scratch']
  %s0 = inlined_call_operand.vmem [shape: f32[16,32], index: 0, kind: input, shape index: {}]
  %s1 = inlined_call_operand.vmem [shape: bf16[32,32], index: 1, kind: input, shape index: {}]
  %s2 = inlined_call_operand.vmem [shape: f32[1,32], index: 2, kind: input, shape index: {}]
  %s3 = inlined_call_operand.vmem [shape: bf16[32,128], index: 3, kind: input, shape index: {}]
  %s4 = inlined_call_operand.vmem [shape: f32[1,128], index: 4, kind: input, shape index: {}]
  %s5 = inlined_call_operand.vmem [shape: f32[16,128], index: 5, kind: output, shape index: {}]
  %s6 = sld [smem:[#allocation0]]
  $region30: #{bert_output_layer_pallas.1} parent=0
    _
  %s8 = ssub.s32 1, %s6
  %s9 = scalar_select 0, %s8, %s6
  // Predicated region
  $region2: #{bert_output_layer_pallas.1} parent=0 // pred_check
    _
  $region3: #{bert_output_layer_pallas.1} parent=0 // pred_check_branch
    %11 = sbr.rel (0) target = $region5
  $region4: #{bert_output_layer_pallas.1} parent=0 // pred_region
    _
  $region5: #{bert_output_layer_pallas.1} parent=0 // pred_fallthru
    _
  // Predicated region
  $region6: #{bert_output_layer_pallas.1} parent=0 // pred_check
    _
  $region7: #{bert_output_layer_pallas.1} parent=0 // pred_check_branch
    %13 = sbr.rel (0) target = $region9
  $region8: #{bert_output_layer_pallas.1} parent=0 // pred_region
    _
  $region9: #{bert_output_layer_pallas.1} parent=0 // pred_fallthru
    _
  // Predicated region
  $region10: #{bert_output_layer_pallas.1} parent=0 // pred_check
    _
  $region11: #{bert_output_layer_pallas.1} parent=0 // pred_check_branch
    %15 = sbr.rel (0) target = $region13
  $region12: #{bert_output_layer_pallas.1} parent=0 // pred_region
    _
  $region13: #{bert_output_layer_pallas.1} parent=0 // pred_fallthru
    _
  // Predicated region
  $region14: #{bert_output_layer_pallas.1} parent=0 // pred_check
    _
  $region15: #{bert_output_layer_pallas.1} parent=0 // pred_check_branch
    %17 = sbr.rel (0) target = $region17
  $region16: #{bert_output_layer_pallas.1} parent=0 // pred_region
    _
  $region17: #{bert_output_layer_pallas.1} parent=0 // pred_fallthru
    _
  // Predicated region
  $region18: #{bert_output_layer_pallas.1} parent=0 // pred_check
    _
  $region19: #{bert_output_layer_pallas.1} parent=0 // pred_check_branch
    %19 = sbr.rel (0) target = $region21
  $region20: #{bert_output_layer_pallas.1} parent=0 // pred_region
    _
  $region21: #{bert_output_layer_pallas.1} parent=0 // pred_fallthru
    _
  %v21 = vld [vmem:[%s0] sm:$0xff]
  %v22 = vld [vmem:[%s0 + $0x8] sm:$0xff]
  %v23 = vpack.c.bf16 %v22, %v21
  %v24 = vld [vmem:[%s1] sm:$0xf]
  %v25 = vld [vmem:[%s1 + $0x4] sm:$0xf]
  %v26 = vld [vmem:[%s1 + $0x8] sm:$0xf]
  %v27 = vld [vmem:[%s1 + $0xc] sm:$0xf]
  %v28 = vld [vmem:[%s2] sm:$0x1]
  %v30 = vlaneseq
  %v31 = vshrl.u32 %v30, 7
  %v32 = vsub.s32 0, %v31
  %v33 = vrot.slane %v28, %v32
  %v39 = vunpack.c.l.b16 %v24
  %v40 = vunpack.c.l.b16 %v25
  %v41 = vunpack.c.l.b16 %v26
  %v42 = vunpack.c.l.b16 %v27
  %v43 = vpack.c.b16 %v40, %v39
  %v44 = vpack.c.b16 %v42, %v41
  %vm47 = vcmask 261120
  %v49 = vsel %vm47, %v23, 0
  %51 = vmatprep.subr.bf16.mxu0 0
  %52 = vmatpush1.bf16.msra.mxu0 %v43
  %53 = vmatprep.subr.bf16.mxu0 0
  %54 = vmatpush1.bf16.msra.mxu0 %v44
  %55 = vmatprep.subr.bf16.mxu0 0
  %56 = vmatpush1.bf16.msra.mxu0 0
  %57 = vmatprep.subr.bf16.mxu0 0
  %58 = vmatpush1.bf16.msra.mxu0 0
  %59 = vmatprep.subr.bf16.mxu0 0
  %60 = vmatpush1.bf16.msra.mxu0 0
  %61 = vmatprep.subr.bf16.mxu0 0
  %62 = vmatpush1.bf16.msra.mxu0 0
  %63 = vmatprep.subr.bf16.mxu0 0
  %64 = vmatpush1.bf16.msra.mxu0 0
  %65 = vmatprep.subr.bf16.mxu0 0
  %66 = vmatpush1.bf16.msra.mxu0 0
  %67 = vmatprep.subr.bf16.mxu0 0
  %68 = vmatpush1.bf16.msra.mxu0 0
  %69 = vmatprep.subr.bf16.mxu0 0
  %70 = vmatpush1.bf16.msra.mxu0 0
  %71 = vmatprep.subr.bf16.mxu0 0
  %72 = vmatpush1.bf16.msra.mxu0 0
  %73 = vmatprep.subr.bf16.mxu0 0
  %74 = vmatpush1.bf16.msra.mxu0 0
  %75 = vmatprep.subr.bf16.mxu0 0
  %76 = vmatpush1.bf16.msra.mxu0 0
  %77 = vmatprep.subr.bf16.mxu0 0
  %78 = vmatpush1.bf16.msra.mxu0 0
  %79 = vmatprep.subr.bf16.mxu0 0
  %80 = vmatpush1.bf16.msra.mxu0 0
  %81 = vmatprep.subr.bf16.mxu0 0
  %82 = vmatpush1.bf16.msra.mxu0 0
  %83 = vmatprep.mubr.bf16.mxu0 0
  %84 = vmatmul.mubr.bf16.gmra.mrb[0].mxu0 %v49
  %v85 = vpop.f32.mrb[0].mxu0
  %v86 = vadd.f32 %v33, %v85
  %v87 = vpop.f32.mrb[0].mxu0
  %v88 = vpop.f32.mrb[0].mxu0
  %v89 = vadd.f32 %v33, %v88
  %v90 = vpop.f32.mrb[0].mxu0
  %91 = vdwg.mxu0
  %v92 = vtanh.pop %v86
  %v93 = vtanh.pop %v89
  %v94 = vpack.c.bf16 %v93, %v92
  %v95 = vld [vmem:[%s3] sm:$0xf]
  %v96 = vld [vmem:[%s3 + $0x4] sm:$0xf]
  %v97 = vld [vmem:[%s3 + $0x8] sm:$0xf]
  %v98 = vld [vmem:[%s3 + $0xc] sm:$0xf]
  %v99 = vld [vmem:[%s4] sm:$0x1]
  %v101 = vlaneseq
  %v102 = vshrl.u32 %v101, 7
  %v103 = vsub.s32 0, %v102
  %v104 = vrot.slane %v99, %v103
  %v110 = vunpack.c.l.b16 %v95
  %v111 = vunpack.c.l.b16 %v96
  %v112 = vunpack.c.l.b16 %v97
  %v113 = vunpack.c.l.b16 %v98
  %v114 = vpack.c.b16 %v111, %v110
  %v115 = vpack.c.b16 %v113, %v112
  %v119 = vsel %vm47, %v94, 0
  %121 = vmatprep.subr.bf16.mxu0 0
  %122 = vmatpush1.bf16.msra.mxu0 %v114
  %123 = vmatprep.subr.bf16.mxu0 0
  %124 = vmatpush1.bf16.msra.mxu0 %v115
  %125 = vmatprep.subr.bf16.mxu0 0
  %126 = vmatpush1.bf16.msra.mxu0 0
  %127 = vmatprep.subr.bf16.mxu0 0
  %128 = vmatpush1.bf16.msra.mxu0 0
  %129 = vmatprep.subr.bf16.mxu0 0
  %130 = vmatpush1.bf16.msra.mxu0 0
  %131 = vmatprep.subr.bf16.mxu0 0
  %132 = vmatpush1.bf16.msra.mxu0 0
  %133 = vmatprep.subr.bf16.mxu0 0
  %134 = vmatpush1.bf16.msra.mxu0 0
  %135 = vmatprep.subr.bf16.mxu0 0
  %136 = vmatpush1.bf16.msra.mxu0 0
  %137 = vmatprep.subr.bf16.mxu0 0
  %138 = vmatpush1.bf16.msra.mxu0 0
  %139 = vmatprep.subr.bf16.mxu0 0
  %140 = vmatpush1.bf16.msra.mxu0 0
  %141 = vmatprep.subr.bf16.mxu0 0
  %142 = vmatpush1.bf16.msra.mxu0 0
  %143 = vmatprep.subr.bf16.mxu0 0
  %144 = vmatpush1.bf16.msra.mxu0 0
  %145 = vmatprep.subr.bf16.mxu0 0
  %146 = vmatpush1.bf16.msra.mxu0 0
  %147 = vmatprep.subr.bf16.mxu0 0
  %148 = vmatpush1.bf16.msra.mxu0 0
  %149 = vmatprep.subr.bf16.mxu0 0
  %150 = vmatpush1.bf16.msra.mxu0 0
  %151 = vmatprep.subr.bf16.mxu0 0
  %152 = vmatpush1.bf16.msra.mxu0 0
  %153 = vmatprep.mubr.bf16.mxu0 0
  %154 = vmatmul.mubr.bf16.gmra.mrb[0].mxu0 %v119
  %v155 = vpop.f32.mrb[0].mxu0
  %v156 = vadd.f32 %v104, %v155
  %v157 = vpop.f32.mrb[0].mxu0
  %v158 = vpop.f32.mrb[0].mxu0
  %v159 = vadd.f32 %v104, %v158
  %v160 = vpop.f32.mrb[0].mxu0
  %161 = vdwg.mxu0
  %162 = vst [vmem:[%s5] sm:$0xff] %v156
  %163 = vst [vmem:[%s5 + $0x8] sm:$0xff] %v159
  // Predicated region
  $region22: #{bert_output_layer_pallas.1} parent=0 // pred_check
    _
  $region23: #{bert_output_layer_pallas.1} parent=0 // pred_check_branch
    %165 = sbr.rel (0) target = $region25
  $region24: #{bert_output_layer_pallas.1} parent=0 // pred_region
    _
  $region25: #{bert_output_layer_pallas.1} parent=0 // pred_fallthru
    _
  // Predicated region
  $region26: #{bert_output_layer_pallas.1} parent=0 // pred_check
    _
  $region27: #{bert_output_layer_pallas.1} parent=0 // pred_check_branch
    %167 = sbr.rel (0) target = $region29
  $region28: #{bert_output_layer_pallas.1} parent=0 // pred_region
    _
  $region29: #{bert_output_layer_pallas.1} parent=0 // pred_fallthru
    _

</llo_original>
